<compile_context>
chip_gen: v7x
topology: tpu7x:2x2x1
jax: 0.10.0
libtpu: 0.0.40
codegen_flags: <defaults>
</compile_context>

<pallas_src>
import functools

import jax
import jax.numpy as jnp
from jax.experimental import pallas as pl
from jax.experimental.pallas import tpu as pltpu


# ---------------------- generation-aware VMEM budget ------------------------ #

def _vmem_limit_bytes():
    """~75% of this generation's per-core VMEM (v5e/v6e: 128 MiB, v7x: 64 MiB)."""
    try:
        cap = int(pltpu.get_tpu_info().vmem_capacity_bytes)
    except Exception:
        cap = 64 * 1024 * 1024          # conservative fallback, safe on v7x too
    return max(16 * 1024 * 1024, (cap * 3) // 4)


def _pick_conv_batch_tile(n, in_rows, out_rows, in_row_bytes, out_row_bytes,
                          scratch_row_bytes, vmem_budget, target_m=512):
    """Batch tile: divides N, keeps block layouts (8,128)-legal, double-buffered
    blocks + scratch fit ~half the VMEM budget, matmul M >= target_m if possible."""
    best = None
    for bt in range(1, n + 1):
        if n % bt:
            continue
        # second-to-minor block dims must be a multiple of 8 unless the block
        # spans the whole array dimension.
        if bt != n and ((bt * in_rows) % 8 or (bt * out_rows) % 8):
            continue
        need = (2 * bt * (in_rows * in_row_bytes + out_rows * out_row_bytes)
                + bt * in_rows * scratch_row_bytes)
        if need > vmem_budget // 2:
            continue
        best = bt
        if bt * in_rows >= target_m:
            break
    return best if best is not None else n


def _pick_head_batch_tile(n, s, c, vmem_budget):
    best = None
    for bt in range(1, n + 1):
        if n % bt:
            continue
        if bt != n and bt % 8:
            continue
        if 2 * bt * (s * c * 2) > vmem_budget // 4:
            continue
        best = bt
    return best if best is not None else n


# ----------------------------- Pallas kernels ------------------------------- #

def _conv_block_kernel(p_ref, w_ref, shift_ref, o_ref, y_ref, *,
                       bt, Ho, Wo, Po, Qo):
    """Fused conv-as-matmul (BN scale folded into W) + shift + ReLU + MaxPool(3,2)."""
    # p_ref: (bt*Ho*Wo, K) bf16, w_ref: (K, Cout) bf16, shift_ref: (1, Cout) f32,
    # o_ref: (bt*Po*Qo, Cout) bf16, y_ref: (bt*Ho*Wo, Cout) f32 VMEM scratch.
    y = jnp.dot(p_ref[...], w_ref[...], preferred_element_type=jnp.float32)
    y_ref[...] = jnp.maximum(y + shift_ref[...], 0.0)        # conv-bias+BN shift, ReLU

    # MaxPool2d(kernel_size=3, stride=2): per pooled row, nine full-width
    # strided (Qo, Cout) loads are max-reduced and written with one store.
    hw, pq = Ho * Wo, Po * Qo
    for b in range(bt):
        for oh in range(Po):
            base = b * hw + 2 * oh * Wo
            m = None
            for di in range(3):
                for dj in range(3):
                    row = y_ref[pl.ds(base + di * Wo + dj, Qo, 2), :]   # (Qo, Cout)
                    m = row if m is None else jnp.maximum(m, row)
            o_ref[pl.ds(b * pq + oh * Qo, Qo), :] = m.astype(o_ref.dtype)


def _head_kernel(*refs, n_layers, activation, inv_spatial):
    """Fused global-avg-pool + ReLU + MLP (+ softmax / log_softmax), one batch tile."""
    x_ref, o_ref = refs[0], refs[-1]
    x = x_ref[...].astype(jnp.float32)                        # (bt, S, C)
    h = jnp.sum(x, axis=1) * inv_spatial                      # adaptive_avg_pool2d(.,1)
    h = jnp.maximum(h, 0.0)                                   # ReLU (+ implicit squeeze)
    for i in range(n_layers):
        w = refs[1 + 2 * i][...]                              # (Din, Dout) bf16
        bvec = refs[2 + 2 * i][...]                           # (1, Dout) f32
        h = jnp.dot(h.astype(w.dtype), w,
                    preferred_element_type=jnp.float32) + bvec
        if i < n_layers - 1:
            h = jnp.maximum(h, 0.0)
    if activation == "softmax":
        m = jnp.max(h, axis=-1, keepdims=True)
        e = jnp.exp(h - m)
        h = e / jnp.sum(e, axis=-1, keepdims=True)            # exact divide
    elif activation == "log_softmax":
        m = jnp.max(h, axis=-1, keepdims=True)
        z = h - m
        h = z - jnp.log(jnp.sum(jnp.exp(z), axis=-1, keepdims=True))
    # activation == "none": identity
    o_ref[...] = h


# ------------------------------ JAX wrappers --------------------------------- #

def conv_block(x_nhwc, w_oihw, b, gamma, beta, running_mean, running_var,
               kernel_size=3, stride=3, eps=1e-5, vmem_budget=None):
    """Conv2d(k=s=3, p=0) + BN(eval) + ReLU + MaxPool2d(3, 2), fused per batch tile."""
    assert kernel_size == stride == 3, "CBR uses kernel_size == stride == 3"
    N, H, W, Cin = x_nhwc.shape
    Cout = w_oihw.shape[0]
    Ho = (H - kernel_size) // stride + 1
    Wo = (W - kernel_size) // stride + 1
    assert Ho >= 3 and Wo >= 3, "MaxPool2d(3, 2) needs a conv output of at least 3x3"
    Po = (Ho - 3) // 2 + 1
    Qo = (Wo - 3) // 2 + 1
    K = kernel_size * kernel_size * Cin
    if vmem_budget is None:
        vmem_budget = _vmem_limit_bytes()

    # im2col for non-overlapping 3x3/stride-3 patches; cast to bf16 first so the
    # XLA-side transpose moves half the bytes.
    # TODO(synk): folding this transpose into the kernel's DMA (kh on the grid +
    # per-kh accumulating dots) needs an in-kernel (B,Ho,Wo,3*Cin)->(M,3*Cin)
    # relayout that is not reliably lowerable for these tiny channel counts.
    xc = x_nhwc[:, :Ho * kernel_size, :Wo * kernel_size, :].astype(jnp.bfloat16)
    patches = xc.reshape(N, Ho, kernel_size, Wo, kernel_size, Cin)
    patches = patches.transpose(0, 1, 3, 2, 4, 5).reshape(N * Ho * Wo, K)

    # Fold conv bias + eval-mode BatchNorm: scale into the weight columns,
    # only the additive shift goes into the kernel.
    scale = gamma / jnp.sqrt(running_var + eps)
    shift = (beta + (b - running_mean) * scale).astype(jnp.float32).reshape(1, Cout)
    w_mat = jnp.transpose(w_oihw, (2, 3, 1, 0)).reshape(K, Cout)
    w_mat = (w_mat * scale[None, :]).astype(jnp.bfloat16)

    bt = _pick_conv_batch_tile(
        N, Ho * Wo, Po * Qo, in_row_bytes=2 * K, out_row_bytes=2 * Cout,
        scratch_row_bytes=4 * Cout, vmem_budget=vmem_budget)

    kernel = functools.partial(_conv_block_kernel, bt=bt, Ho=Ho, Wo=Wo, Po=Po, Qo=Qo)
    out = pl.pallas_call(
        kernel,
        out_shape=jax.ShapeDtypeStruct((N * Po * Qo, Cout), jnp.bfloat16),
        grid=(N // bt,),
        in_specs=[
            pl.BlockSpec((bt * Ho * Wo, K), lambda i: (i, 0)),   # patch rows
            pl.BlockSpec((K, Cout), lambda i: (0, 0)),           # scaled weights
            pl.BlockSpec((1, Cout), lambda i: (0, 0)),           # shift
        ],
        out_specs=pl.BlockSpec((bt * Po * Qo, Cout), lambda i: (i, 0)),
        scratch_shapes=[pltpu.VMEM((bt * Ho * Wo, Cout), jnp.float32)],
        compiler_params=pltpu.CompilerParams(
            dimension_semantics=("parallel",),
            vmem_limit_bytes=vmem_budget),
    )(patches, w_mat, shift)
    # NHWC for the next conv block / the head (pure metadata reshape).
    return out.reshape(N, Po, Qo, Cout)


def head(x_nhwc, mlp_params, cnn_softmax_function, vmem_budget=None):
    """GAP + ReLU + MLP + (softmax | log_softmax | none), gridded over batch tiles."""
    N, Ph, Qh, C = x_nhwc.shape
    S = Ph * Qh
    x = x_nhwc.reshape(N, S, C)
    if vmem_budget is None:
        vmem_budget = _vmem_limit_bytes()
    act = {"softmax": "softmax",
           "log_softmax": "log_softmax",
           "none": "none"}[cnn_softmax_function]
    n_layers = len(mlp_params)
    dout = mlp_params[-1][0].shape[1]

    bt = _pick_head_batch_tile(N, S, C, vmem_budget)
    flat = []
    in_specs = [pl.BlockSpec((bt, S, C), lambda i: (i, 0, 0))]
    for (w, b) in mlp_params:
        din, dw = w.shape
        flat.append(w.astype(jnp.bfloat16))
        flat.append(b.reshape(1, -1).astype(jnp.float32))
        in_specs.append(pl.BlockSpec((din, dw), lambda i: (0, 0)))
        in_specs.append(pl.BlockSpec((1, dw), lambda i: (0, 0)))

    kernel = functools.partial(_head_kernel, n_layers=n_layers, activation=act,
                               inv_spatial=1.0 / float(S))
    return pl.pallas_call(
        kernel,
        out_shape=jax.ShapeDtypeStruct((N, dout), jnp.float32),
        grid=(N // bt,),
        in_specs=in_specs,
        out_specs=pl.BlockSpec((bt, dout), lambda i: (i, 0)),
        compiler_params=pltpu.CompilerParams(
            dimension_semantics=("parallel",),
            vmem_limit_bytes=vmem_budget),
    )(x, *flat)


def cbr_forward(x_nchw, params, *, cnn_softmax_function="softmax"):
    vmem_budget = _vmem_limit_bytes()
    # NCHW (PyTorch) -> NHWC (channels on the lane axis).
    x = jnp.transpose(x_nchw, (0, 2, 3, 1))
    # cnn_encoder: [Conv2d(k=3,s=3,p=0) + BN + ReLU + MaxPool2d(3, 2)] * L.
    # TODO(synk): all conv blocks + the head could be fused into one pallas_call
    # with intermediates held in VMEM scratch; kept as one fused call per block
    # for shape generality.
    for (w, b, gamma, beta, rm, rv) in params["conv_blocks"]:
        x = conv_block(x, w, b, gamma, beta, rm, rv, vmem_budget=vmem_budget)
    # adaptive_avg_pool2d + ReLU + squeeze + MLP (+ CBR softmax).
    return head(x, params["mlp"], cnn_softmax_function, vmem_budget=vmem_budget)


def init_params(key, input_channels, hidden_channels, kernel_size,
                mlp_input_dim, mlp_hidden_dims, mlp_output_dim):
    params = {"conv_blocks": [], "mlp": []}
    cin = input_channels
    for h in hidden_channels:
        key, k1, k2 = jax.random.split(key, 3)
        w = jax.random.normal(k1, (h, cin, kernel_size, kernel_size),
                              jnp.float32) * 0.1             # (Cout, Cin, kh, kw)
        b = jax.random.normal(k2, (h,), jnp.float32) * 0.01
        gamma = jnp.ones((h,), jnp.float32)                   # BN fresh init
        beta = jnp.zeros((h,), jnp.float32)
        rm = jnp.zeros((h,), jnp.float32)
        rv = jnp.ones((h,), jnp.float32)
        params["conv_blocks"].append((w, b, gamma, beta, rm, rv))
        cin = h
    dims = [mlp_input_dim] + list(mlp_hidden_dims) + [mlp_output_dim]
    for i in range(len(dims) - 1):
        key, k1, k2 = jax.random.split(key, 3)
        w = jax.random.normal(k1, (dims[i], dims[i + 1]), jnp.float32) * 0.1
        b = jax.random.normal(k2, (dims[i + 1],), jnp.float32) * 0.01
        params["mlp"].append((w, b))
    return params


if __name__ == "__main__":
    batch, in_ch, img = 2, 3, 16
    hidden_channels = [8]          # one CBR block: 16 -> conv(5x5) -> pool(2x2)
    mlp_hidden_dims = [32]
    n_classes = 10

    key = jax.random.PRNGKey(0)
    key, kx = jax.random.split(key)
    x = jax.random.normal(kx, (batch, in_ch, img, img), jnp.float32)

    params = init_params(key, in_ch, hidden_channels, 3,
                         hidden_channels[-1], mlp_hidden_dims, n_classes)

    fwd = jax.jit(functools.partial(cbr_forward, cnn_softmax_function="softmax"))
    out = fwd(x, params)
    out = jax.block_until_ready(out)

    assert out.shape == (batch, n_classes), out.shape
    assert bool(jnp.all(jnp.isfinite(out)))
    row_sums = jnp.sum(out, axis=1)
    # exact softmax divide -> rows sum to 1 up to f32 rounding
    assert bool(jnp.all(jnp.abs(row_sums - 1.0) < 1e-3)), row_sums
    print("KERNEL_OK")
</pallas_src>

<mosaic_0001>
module attributes {stable_mosaic.version = 11 : i64} {
  func.func @_conv_block_kernel(%arg0: i32, %arg1: memref<50x27xbf16, #tpu.memory_space<vmem>>, %arg2: memref<27x8xbf16, #tpu.memory_space<vmem>>, %arg3: memref<1x8xf32, #tpu.memory_space<vmem>>, %arg4: memref<8x8xbf16, #tpu.memory_space<vmem>>, %arg5: memref<50x8xf32, #tpu.memory_space<vmem>>) attributes {dimension_semantics = [#tpu.dimension_semantics<parallel>], iteration_bounds = array<i64: 1>, scalar_prefetch = 0 : i64, scratch_operands = 1 : i64, tpu.core_type = #tpu.core_type<tc>, window_params = [{transform_indices = @transform_0, window_bounds = array<i64: 50, 27>}, {pipeline_mode = #tpu.pipeline_mode<synchronous>, transform_indices = @transform_1, window_bounds = array<i64: 27, 8>}, {pipeline_mode = #tpu.pipeline_mode<synchronous>, transform_indices = @transform_2, window_bounds = array<i64: 1, 8>}, {transform_indices = @transform_3, window_bounds = array<i64: 8, 8>}]} {
    %c0 = arith.constant 0 : index
    %c0_0 = arith.constant 0 : index
    %0 = vector.load %arg1[%c0, %c0_0] : memref<50x27xbf16, #tpu.memory_space<vmem>>, vector<50x27xbf16>
    %c0_1 = arith.constant 0 : index
    %c0_2 = arith.constant 0 : index
    %1 = vector.load %arg2[%c0_1, %c0_2] : memref<27x8xbf16, #tpu.memory_space<vmem>>, vector<27x8xbf16>
    %cst = arith.constant dense<0.000000e+00> : vector<50x8xf32>
    %2 = tpu.matmul %0, %1, %cst {dimension_numbers = #tpu.dot_dimension_numbers<[1], [0], [0], [1], [0, 0, 1, 1], [], []>} : vector<50x27xbf16>, vector<27x8xbf16>, vector<50x8xf32> -> vector<50x8xf32>
    %c0_3 = arith.constant 0 : index
    %c0_4 = arith.constant 0 : index
    %3 = vector.load %arg3[%c0_3, %c0_4] : memref<1x8xf32, #tpu.memory_space<vmem>>, vector<1x8xf32>
    %4 = vector.broadcast %3 : vector<1x8xf32> to vector<50x8xf32>
    %5 = arith.addf %2, %4 : vector<50x8xf32>
    %cst_5 = arith.constant 0.000000e+00 : f32
    %6 = vector.broadcast %cst_5 : f32 to vector<50x8xf32>
    %7 = arith.maximumf %5, %6 : vector<50x8xf32>
    %c0_6 = arith.constant 0 : index
    %c0_7 = arith.constant 0 : index
    %8 = vector.load %arg5[%c0_6, %c0_7] : memref<50x8xf32, #tpu.memory_space<vmem>>, vector<50x8xf32>
    tpu.vector_store %arg5[%c0_6, %c0_7], %7 {strides = array<i32>} : memref<50x8xf32, #tpu.memory_space<vmem>>, vector<50x8xf32>,
    %c0_8 = arith.constant 0 : index
    %c0_9 = arith.constant 0 : index
    %9 = tpu.strided_load %arg5[%c0_8, %c0_9] {strides = array<i32: 2, 1>} : memref<50x8xf32, #tpu.memory_space<vmem>>, vector<2x8xf32>
    %c1 = arith.constant 1 : index
    %c0_10 = arith.constant 0 : index
    %10 = tpu.strided_load %arg5[%c1, %c0_10] {strides = array<i32: 2, 1>} : memref<50x8xf32, #tpu.memory_space<vmem>>, vector<2x8xf32>
    %11 = arith.maximumf %9, %10 : vector<2x8xf32>
    %c2 = arith.constant 2 : index
    %c0_11 = arith.constant 0 : index
    %12 = tpu.strided_load %arg5[%c2, %c0_11] {strides = array<i32: 2, 1>} : memref<50x8xf32, #tpu.memory_space<vmem>>, vector<2x8xf32>
    %13 = arith.maximumf %11, %12 : vector<2x8xf32>
    %c5 = arith.constant 5 : index
    %c0_12 = arith.constant 0 : index
    %14 = tpu.strided_load %arg5[%c5, %c0_12] {strides = array<i32: 2, 1>} : memref<50x8xf32, #tpu.memory_space<vmem>>, vector<2x8xf32>
    %15 = arith.maximumf %13, %14 : vector<2x8xf32>
    %c6 = arith.constant 6 : index
    %c0_13 = arith.constant 0 : index
    %16 = tpu.strided_load %arg5[%c6, %c0_13] {strides = array<i32: 2, 1>} : memref<50x8xf32, #tpu.memory_space<vmem>>, vector<2x8xf32>
    %17 = arith.maximumf %15, %16 : vector<2x8xf32>
    %c7 = arith.constant 7 : index
    %c0_14 = arith.constant 0 : index
    %18 = tpu.strided_load %arg5[%c7, %c0_14] {strides = array<i32: 2, 1>} : memref<50x8xf32, #tpu.memory_space<vmem>>, vector<2x8xf32>
    %19 = arith.maximumf %17, %18 : vector<2x8xf32>
    %c10 = arith.constant 10 : index
    %c0_15 = arith.constant 0 : index
    %20 = tpu.strided_load %arg5[%c10, %c0_15] {strides = array<i32: 2, 1>} : memref<50x8xf32, #tpu.memory_space<vmem>>, vector<2x8xf32>
    %21 = arith.maximumf %19, %20 : vector<2x8xf32>
    %c11 = arith.constant 11 : index
    %c0_16 = arith.constant 0 : index
    %22 = tpu.strided_load %arg5[%c11, %c0_16] {strides = array<i32: 2, 1>} : memref<50x8xf32, #tpu.memory_space<vmem>>, vector<2x8xf32>
    %23 = arith.maximumf %21, %22 : vector<2x8xf32>
    %c12 = arith.constant 12 : index
    %c0_17 = arith.constant 0 : index
    %24 = tpu.strided_load %arg5[%c12, %c0_17] {strides = array<i32: 2, 1>} : memref<50x8xf32, #tpu.memory_space<vmem>>, vector<2x8xf32>
    %25 = arith.maximumf %23, %24 : vector<2x8xf32>
    %26 = arith.truncf %25 : vector<2x8xf32> to vector<2x8xbf16>
    %c0_18 = arith.constant 0 : index
    %c0_19 = arith.constant 0 : index
    %27 = vector.load %arg4[%c0_18, %c0_19] : memref<8x8xbf16, #tpu.memory_space<vmem>>, vector<2x8xbf16>
    tpu.vector_store %arg4[%c0_18, %c0_19], %26 {strides = array<i32>} : memref<8x8xbf16, #tpu.memory_space<vmem>>, vector<2x8xbf16>,
    %c10_20 = arith.constant 10 : index
    %c0_21 = arith.constant 0 : index
    %28 = tpu.strided_load %arg5[%c10_20, %c0_21] {strides = array<i32: 2, 1>} : memref<50x8xf32, #tpu.memory_space<vmem>>, vector<2x8xf32>
    %c11_22 = arith.constant 11 : index
    %c0_23 = arith.constant 0 : index
    %29 = tpu.strided_load %arg5[%c11_22, %c0_23] {strides = array<i32: 2, 1>} : memref<50x8xf32, #tpu.memory_space<vmem>>, vector<2x8xf32>
    %30 = arith.maximumf %28, %29 : vector<2x8xf32>
    %c12_24 = arith.constant 12 : index
    %c0_25 = arith.constant 0 : index
    %31 = tpu.strided_load %arg5[%c12_24, %c0_25] {strides = array<i32: 2, 1>} : memref<50x8xf32, #tpu.memory_space<vmem>>, vector<2x8xf32>
    %32 = arith.maximumf %30, %31 : vector<2x8xf32>
    %c15 = arith.constant 15 : index
    %c0_26 = arith.constant 0 : index
    %33 = tpu.strided_load %arg5[%c15, %c0_26] {strides = array<i32: 2, 1>} : memref<50x8xf32, #tpu.memory_space<vmem>>, vector<2x8xf32>
    %34 = arith.maximumf %32, %33 : vector<2x8xf32>
    %c16 = arith.constant 16 : index
    %c0_27 = arith.constant 0 : index
    %35 = tpu.strided_load %arg5[%c16, %c0_27] {strides = array<i32: 2, 1>} : memref<50x8xf32, #tpu.memory_space<vmem>>, vector<2x8xf32>
    %36 = arith.maximumf %34, %35 : vector<2x8xf32>
    %c17 = arith.constant 17 : index
    %c0_28 = arith.constant 0 : index
    %37 = tpu.strided_load %arg5[%c17, %c0_28] {strides = array<i32: 2, 1>} : memref<50x8xf32, #tpu.memory_space<vmem>>, vector<2x8xf32>
    %38 = arith.maximumf %36, %37 : vector<2x8xf32>
    %c20 = arith.constant 20 : index
    %c0_29 = arith.constant 0 : index
    %39 = tpu.strided_load %arg5[%c20, %c0_29] {strides = array<i32: 2, 1>} : memref<50x8xf32, #tpu.memory_space<vmem>>, vector<2x8xf32>
    %40 = arith.maximumf %38, %39 : vector<2x8xf32>
    %c21 = arith.constant 21 : index
    %c0_30 = arith.constant 0 : index
    %41 = tpu.strided_load %arg5[%c21, %c0_30] {strides = array<i32: 2, 1>} : memref<50x8xf32, #tpu.memory_space<vmem>>, vector<2x8xf32>
    %42 = arith.maximumf %40, %41 : vector<2x8xf32>
    %c22 = arith.constant 22 : index
    %c0_31 = arith.constant 0 : index
    %43 = tpu.strided_load %arg5[%c22, %c0_31] {strides = array<i32: 2, 1>} : memref<50x8xf32, #tpu.memory_space<vmem>>, vector<2x8xf32>
    %44 = arith.maximumf %42, %43 : vector<2x8xf32>
    %45 = arith.truncf %44 : vector<2x8xf32> to vector<2x8xbf16>
    %c2_32 = arith.constant 2 : index
    %c0_33 = arith.constant 0 : index
    %46 = vector.load %arg4[%c2_32, %c0_33] : memref<8x8xbf16, #tpu.memory_space<vmem>>, vector<2x8xbf16>
    tpu.vector_store %arg4[%c2_32, %c0_33], %45 {strides = array<i32>} : memref<8x8xbf16, #tpu.memory_space<vmem>>, vector<2x8xbf16>,
    %c25 = arith.constant 25 : index
    %c0_34 = arith.constant 0 : index
    %47 = tpu.strided_load %arg5[%c25, %c0_34] {strides = array<i32: 2, 1>} : memref<50x8xf32, #tpu.memory_space<vmem>>, vector<2x8xf32>
    %c26 = arith.constant 26 : index
    %c0_35 = arith.constant 0 : index
    %48 = tpu.strided_load %arg5[%c26, %c0_35] {strides = array<i32: 2, 1>} : memref<50x8xf32, #tpu.memory_space<vmem>>, vector<2x8xf32>
    %49 = arith.maximumf %47, %48 : vector<2x8xf32>
    %c27 = arith.constant 27 : index
    %c0_36 = arith.constant 0 : index
    %50 = tpu.strided_load %arg5[%c27, %c0_36] {strides = array<i32: 2, 1>} : memref<50x8xf32, #tpu.memory_space<vmem>>, vector<2x8xf32>
    %51 = arith.maximumf %49, %50 : vector<2x8xf32>
    %c30 = arith.constant 30 : index
    %c0_37 = arith.constant 0 : index
    %52 = tpu.strided_load %arg5[%c30, %c0_37] {strides = array<i32: 2, 1>} : memref<50x8xf32, #tpu.memory_space<vmem>>, vector<2x8xf32>
    %53 = arith.maximumf %51, %52 : vector<2x8xf32>
    %c31 = arith.constant 31 : index
    %c0_38 = arith.constant 0 : index
    %54 = tpu.strided_load %arg5[%c31, %c0_38] {strides = array<i32: 2, 1>} : memref<50x8xf32, #tpu.memory_space<vmem>>, vector<2x8xf32>
    %55 = arith.maximumf %53, %54 : vector<2x8xf32>
    %c32 = arith.constant 32 : index
    %c0_39 = arith.constant 0 : index
    %56 = tpu.strided_load %arg5[%c32, %c0_39] {strides = array<i32: 2, 1>} : memref<50x8xf32, #tpu.memory_space<vmem>>, vector<2x8xf32>
    %57 = arith.maximumf %55, %56 : vector<2x8xf32>
    %c35 = arith.constant 35 : index
    %c0_40 = arith.constant 0 : index
    %58 = tpu.strided_load %arg5[%c35, %c0_40] {strides = array<i32: 2, 1>} : memref<50x8xf32, #tpu.memory_space<vmem>>, vector<2x8xf32>
    %59 = arith.maximumf %57, %58 : vector<2x8xf32>
    %c36 = arith.constant 36 : index
    %c0_41 = arith.constant 0 : index
    %60 = tpu.strided_load %arg5[%c36, %c0_41] {strides = array<i32: 2, 1>} : memref<50x8xf32, #tpu.memory_space<vmem>>, vector<2x8xf32>
    %61 = arith.maximumf %59, %60 : vector<2x8xf32>
    %c37 = arith.constant 37 : index
    %c0_42 = arith.constant 0 : index
    %62 = tpu.strided_load %arg5[%c37, %c0_42] {strides = array<i32: 2, 1>} : memref<50x8xf32, #tpu.memory_space<vmem>>, vector<2x8xf32>
    %63 = arith.maximumf %61, %62 : vector<2x8xf32>
    %64 = arith.truncf %63 : vector<2x8xf32> to vector<2x8xbf16>
    %c4 = arith.constant 4 : index
    %c0_43 = arith.constant 0 : index
    %65 = vector.load %arg4[%c4, %c0_43] : memref<8x8xbf16, #tpu.memory_space<vmem>>, vector<2x8xbf16>
    tpu.vector_store %arg4[%c4, %c0_43], %64 {strides = array<i32>} : memref<8x8xbf16, #tpu.memory_space<vmem>>, vector<2x8xbf16>,
    %c35_44 = arith.constant 35 : index
    %c0_45 = arith.constant 0 : index
    %66 = tpu.strided_load %arg5[%c35_44, %c0_45] {strides = array<i32: 2, 1>} : memref<50x8xf32, #tpu.memory_space<vmem>>, vector<2x8xf32>
    %c36_46 = arith.constant 36 : index
    %c0_47 = arith.constant 0 : index
    %67 = tpu.strided_load %arg5[%c36_46, %c0_47] {strides = array<i32: 2, 1>} : memref<50x8xf32, #tpu.memory_space<vmem>>, vector<2x8xf32>
    %68 = arith.maximumf %66, %67 : vector<2x8xf32>
    %c37_48 = arith.constant 37 : index
    %c0_49 = arith.constant 0 : index
    %69 = tpu.strided_load %arg5[%c37_48, %c0_49] {strides = array<i32: 2, 1>} : memref<50x8xf32, #tpu.memory_space<vmem>>, vector<2x8xf32>
    %70 = arith.maximumf %68, %69 : vector<2x8xf32>
    %c40 = arith.constant 40 : index
    %c0_50 = arith.constant 0 : index
    %71 = tpu.strided_load %arg5[%c40, %c0_50] {strides = array<i32: 2, 1>} : memref<50x8xf32, #tpu.memory_space<vmem>>, vector<2x8xf32>
    %72 = arith.maximumf %70, %71 : vector<2x8xf32>
    %c41 = arith.constant 41 : index
    %c0_51 = arith.constant 0 : index
    %73 = tpu.strided_load %arg5[%c41, %c0_51] {strides = array<i32: 2, 1>} : memref<50x8xf32, #tpu.memory_space<vmem>>, vector<2x8xf32>
    %74 = arith.maximumf %72, %73 : vector<2x8xf32>
    %c42 = arith.constant 42 : index
    %c0_52 = arith.constant 0 : index
    %75 = tpu.strided_load %arg5[%c42, %c0_52] {strides = array<i32: 2, 1>} : memref<50x8xf32, #tpu.memory_space<vmem>>, vector<2x8xf32>
    %76 = arith.maximumf %74, %75 : vector<2x8xf32>
    %c45 = arith.constant 45 : index
    %c0_53 = arith.constant 0 : index
    %77 = tpu.strided_load %arg5[%c45, %c0_53] {strides = array<i32: 2, 1>} : memref<50x8xf32, #tpu.memory_space<vmem>>, vector<2x8xf32>
    %78 = arith.maximumf %76, %77 : vector<2x8xf32>
    %c46 = arith.constant 46 : index
    %c0_54 = arith.constant 0 : index
    %79 = tpu.strided_load %arg5[%c46, %c0_54] {strides = array<i32: 2, 1>} : memref<50x8xf32, #tpu.memory_space<vmem>>, vector<2x8xf32>
    %80 = arith.maximumf %78, %79 : vector<2x8xf32>
    %c47 = arith.constant 47 : index
    %c0_55 = arith.constant 0 : index
    %81 = tpu.strided_load %arg5[%c47, %c0_55] {strides = array<i32: 2, 1>} : memref<50x8xf32, #tpu.memory_space<vmem>>, vector<2x8xf32>
    %82 = arith.maximumf %80, %81 : vector<2x8xf32>
    %83 = arith.truncf %82 : vector<2x8xf32> to vector<2x8xbf16>
    %c6_56 = arith.constant 6 : index
    %c0_57 = arith.constant 0 : index
    %84 = vector.load %arg4[%c6_56, %c0_57] : memref<8x8xbf16, #tpu.memory_space<vmem>>, vector<2x8xbf16>
    tpu.vector_store %arg4[%c6_56, %c0_57], %83 {strides = array<i32>} : memref<8x8xbf16, #tpu.memory_space<vmem>>, vector<2x8xbf16>,
    return
  }
  func.func @transform_0(%arg0: i32) -> (i32, i32) {
    %c0_i32 = arith.constant 0 : i32
    %c0_i32_0 = arith.constant 0 : i32
    return %arg0, %c0_i32 : i32, i32
  }
  func.func @transform_1(%arg0: i32) -> (i32, i32) {
    %c0_i32 = arith.constant 0 : i32
    %c0_i32_0 = arith.constant 0 : i32
    %c0_i32_1 = arith.constant 0 : i32
    return %c0_i32, %c0_i32_0 : i32, i32
  }
  func.func @transform_2(%arg0: i32) -> (i32, i32) {
    %c0_i32 = arith.constant 0 : i32
    %c0_i32_0 = arith.constant 0 : i32
    %c0_i32_1 = arith.constant 0 : i32
    return %c0_i32, %c0_i32_0 : i32, i32
  }
  func.func @transform_3(%arg0: i32) -> (i32, i32) {
    %c0_i32 = arith.constant 0 : i32
    %c0_i32_0 = arith.constant 0 : i32
    return %arg0, %c0_i32 : i32, i32
  }
}

module attributes {stable_mosaic.version = 11 : i64} {
  func.func @_head_kernel(%arg0: i32, %arg1: memref<2x4x8xbf16, #tpu.memory_space<vmem>>, %arg2: memref<8x32xbf16, #tpu.memory_space<vmem>>, %arg3: memref<1x32xf32, #tpu.memory_space<vmem>>, %arg4: memref<32x10xbf16, #tpu.memory_space<vmem>>, %arg5: memref<1x10xf32, #tpu.memory_space<vmem>>, %arg6: memref<2x10xf32, #tpu.memory_space<vmem>>) attributes {dimension_semantics = [#tpu.dimension_semantics<parallel>], iteration_bounds = array<i64: 1>, scalar_prefetch = 0 : i64, scratch_operands = 0 : i64, tpu.core_type = #tpu.core_type<tc>, window_params = [{transform_indices = @transform_0, window_bounds = array<i64: 2, 4, 8>}, {pipeline_mode = #tpu.pipeline_mode<synchronous>, transform_indices = @transform_1, window_bounds = array<i64: 8, 32>}, {pipeline_mode = #tpu.pipeline_mode<synchronous>, transform_indices = @transform_2, window_bounds = array<i64: 1, 32>}, {pipeline_mode = #tpu.pipeline_mode<synchronous>, transform_indices = @transform_3, window_bounds = array<i64: 32, 10>}, {pipeline_mode = #tpu.pipeline_mode<synchronous>, transform_indices = @transform_4, window_bounds = array<i64: 1, 10>}, {transform_indices = @transform_5, window_bounds = array<i64: 2, 10>}]} {
    %c0 = arith.constant 0 : index
    %c0_0 = arith.constant 0 : index
    %c0_1 = arith.constant 0 : index
    %0 = vector.load %arg1[%c0, %c0_0, %c0_1] : memref<2x4x8xbf16, #tpu.memory_space<vmem>>, vector<2x4x8xbf16>
    %1 = arith.extf %0 : vector<2x4x8xbf16> to vector<2x4x8xf32>
    %cst = arith.constant dense<0.000000e+00> : vector<2x8xf32>
    %2 = vector.multi_reduction <add>, %1, %cst [1] : vector<2x4x8xf32> to vector<2x8xf32>
    %cst_2 = arith.constant 2.500000e-01 : f32
    %3 = vector.broadcast %cst_2 : f32 to vector<2x8xf32>
    %4 = arith.mulf %2, %3 : vector<2x8xf32>
    %cst_3 = arith.constant 0.000000e+00 : f32
    %5 = vector.broadcast %cst_3 : f32 to vector<2x8xf32>
    %6 = arith.maximumf %4, %5 : vector<2x8xf32>
    %c0_4 = arith.constant 0 : index
    %c0_5 = arith.constant 0 : index
    %7 = vector.load %arg2[%c0_4, %c0_5] : memref<8x32xbf16, #tpu.memory_space<vmem>>, vector<8x32xbf16>
    %c0_6 = arith.constant 0 : index
    %c0_7 = arith.constant 0 : index
    %8 = vector.load %arg3[%c0_6, %c0_7] : memref<1x32xf32, #tpu.memory_space<vmem>>, vector<1x32xf32>
    %9 = arith.truncf %6 : vector<2x8xf32> to vector<2x8xbf16>
    %cst_8 = arith.constant dense<0.000000e+00> : vector<2x32xf32>
    %10 = tpu.matmul %9, %7, %cst_8 {dimension_numbers = #tpu.dot_dimension_numbers<[1], [0], [0], [1], [0, 0, 1, 1], [], []>} : vector<2x8xbf16>, vector<8x32xbf16>, vector<2x32xf32> -> vector<2x32xf32>
    %11 = vector.broadcast %8 : vector<1x32xf32> to vector<2x32xf32>
    %12 = arith.addf %10, %11 : vector<2x32xf32>
    %cst_9 = arith.constant 0.000000e+00 : f32
    %13 = vector.broadcast %cst_9 : f32 to vector<2x32xf32>
    %14 = arith.maximumf %12, %13 : vector<2x32xf32>
    %c0_10 = arith.constant 0 : index
    %c0_11 = arith.constant 0 : index
    %15 = vector.load %arg4[%c0_10, %c0_11] : memref<32x10xbf16, #tpu.memory_space<vmem>>, vector<32x10xbf16>
    %c0_12 = arith.constant 0 : index
    %c0_13 = arith.constant 0 : index
    %16 = vector.load %arg5[%c0_12, %c0_13] : memref<1x10xf32, #tpu.memory_space<vmem>>, vector<1x10xf32>
    %17 = arith.truncf %14 : vector<2x32xf32> to vector<2x32xbf16>
    %cst_14 = arith.constant dense<0.000000e+00> : vector<2x10xf32>
    %18 = tpu.matmul %17, %15, %cst_14 {dimension_numbers = #tpu.dot_dimension_numbers<[1], [0], [0], [1], [0, 0, 1, 1], [], []>} : vector<2x32xbf16>, vector<32x10xbf16>, vector<2x10xf32> -> vector<2x10xf32>
    %19 = vector.broadcast %16 : vector<1x10xf32> to vector<2x10xf32>
    %20 = arith.addf %18, %19 : vector<2x10xf32>
    %cst_15 = arith.constant dense<0xFF800000> : vector<2xf32>
    %21 = vector.multi_reduction <maximumf>, %20, %cst_15 [1] : vector<2x10xf32> to vector<2xf32>
    %22 = vector.shape_cast %21 : vector<2xf32> to vector<2x1xf32>
    %23 = vector.broadcast %22 : vector<2x1xf32> to vector<2x10xf32>
    %24 = arith.subf %20, %23 : vector<2x10xf32>
    %25 = math.exp %24 : vector<2x10xf32>
    %cst_16 = arith.constant dense<0.000000e+00> : vector<2xf32>
    %26 = vector.multi_reduction <add>, %25, %cst_16 [1] : vector<2x10xf32> to vector<2xf32>
    %27 = vector.shape_cast %26 : vector<2xf32> to vector<2x1xf32>
    %28 = vector.broadcast %27 : vector<2x1xf32> to vector<2x10xf32>
    %29 = arith.divf %25, %28 : vector<2x10xf32>
    %c0_17 = arith.constant 0 : index
    %c0_18 = arith.constant 0 : index
    %30 = vector.load %arg6[%c0_17, %c0_18] : memref<2x10xf32, #tpu.memory_space<vmem>>, vector<2x10xf32>
    tpu.vector_store %arg6[%c0_17, %c0_18], %29 {strides = array<i32>} : memref<2x10xf32, #tpu.memory_space<vmem>>, vector<2x10xf32>,
    return
  }
  func.func @transform_0(%arg0: i32) -> (i32, i32, i32) {
    %c0_i32 = arith.constant 0 : i32
    %c0_i32_0 = arith.constant 0 : i32
    %c0_i32_1 = arith.constant 0 : i32
    return %arg0, %c0_i32, %c0_i32_0 : i32, i32, i32
  }
  func.func @transform_1(%arg0: i32) -> (i32, i32) {
    %c0_i32 = arith.constant 0 : i32
    %c0_i32_0 = arith.constant 0 : i32
    %c0_i32_1 = arith.constant 0 : i32
    return %c0_i32, %c0_i32_0 : i32, i32
  }
  func.func @transform_2(%arg0: i32) -> (i32, i32) {
    %c0_i32 = arith.constant 0 : i32
    %c0_i32_0 = arith.constant 0 : i32
    %c0_i32_1 = arith.constant 0 : i32
    return %c0_i32, %c0_i32_0 : i32, i32
  }
  func.func @transform_3(%arg0: i32) -> (i32, i32) {
    %c0_i32 = arith.constant 0 : i32
    %c0_i32_0 = arith.constant 0 : i32
    %c0_i32_1 = arith.constant 0 : i32
    return %c0_i32, %c0_i32_0 : i32, i32
  }
  func.func @transform_4(%arg0: i32) -> (i32, i32) {
    %c0_i32 = arith.constant 0 : i32
    %c0_i32_0 = arith.constant 0 : i32
    %c0_i32_1 = arith.constant 0 : i32
    return %c0_i32, %c0_i32_0 : i32, i32
  }
  func.func @transform_5(%arg0: i32) -> (i32, i32) {
    %c0_i32 = arith.constant 0 : i32
    %c0_i32_0 = arith.constant 0 : i32
    return %arg0, %c0_i32 : i32, i32
  }
}

</mosaic_0001>

<llo_original>
// kernel: cbr_forward.3
$region0: #{cbr_forward.3}
  #allocation0 [shape = 'u32[]', space=smem, size = 0x4, offset = 0x4, fixed_abs, tag = 'smem constant byte address 0x4 - core index']
  #allocation1 [shape = 'u32[144,128]{1,0:T(1,128)}', space=vmem, size = 0x12000, scoped, tag = 'internal scratch']
  %s0 = inlined_call_operand.vmem [shape: bf16[2,4,8], index: 0, kind: input, shape index: {}]
  %s1 = inlined_call_operand.vmem [shape: bf16[8,32], index: 1, kind: input, shape index: {}]
  %s2 = inlined_call_operand.vmem [shape: f32[1,32], index: 2, kind: input, shape index: {}]
  %s3 = inlined_call_operand.vmem [shape: bf16[32,10], index: 3, kind: input, shape index: {}]
  %s4 = inlined_call_operand.vmem [shape: f32[1,10], index: 4, kind: input, shape index: {}]
  %s5 = inlined_call_operand.hbm [shape: f32[2,10], index: 5, kind: output, shape index: {}]
  %s6 = sld [smem:[#allocation0]]
  $region30: #{cbr_forward.3} parent=0
    _
  %s8 = ssub.s32 1, %s6
  %s9 = scalar_select 0, %s8, %s6
  $region1: #{cbr_forward.3} parent=0
    #allocation2 [shape = 'u8[1024]{0}', space=vmem, size = 0x400, scoped, tag = 'output window, operand 0, single buffered']
    #allocation3 [shape = 's32[1]{0}', space=sflag, size = 0x4, scoped, tag = 'scoped memory for cbr_forward.3']
    %10 = vsyncpa [#allocation3], 0
    // Predicated region
    $region2: #{cbr_forward.3} parent=1 // pred_check
      _
    $region3: #{cbr_forward.3} parent=1 // pred_check_branch
      %12 = sbr.rel (0) target = $region5
    $region4: #{cbr_forward.3} parent=1 // pred_region
      _
    $region5: #{cbr_forward.3} parent=1 // pred_fallthru
      _
    // Predicated region
    $region6: #{cbr_forward.3} parent=1 // pred_check
      _
    $region7: #{cbr_forward.3} parent=1 // pred_check_branch
      %14 = sbr.rel (0) target = $region9
    $region8: #{cbr_forward.3} parent=1 // pred_region
      _
    $region9: #{cbr_forward.3} parent=1 // pred_fallthru
      _
    // Predicated region
    $region10: #{cbr_forward.3} parent=1 // pred_check
      _
    $region11: #{cbr_forward.3} parent=1 // pred_check_branch
      %16 = sbr.rel (0) target = $region13
    $region12: #{cbr_forward.3} parent=1 // pred_region
      _
    $region13: #{cbr_forward.3} parent=1 // pred_fallthru
      _
    // Predicated region
    $region14: #{cbr_forward.3} parent=1 // pred_check
      _
    $region15: #{cbr_forward.3} parent=1 // pred_check_branch
      %18 = sbr.rel (0) target = $region17
    $region16: #{cbr_forward.3} parent=1 // pred_region
      _
    $region17: #{cbr_forward.3} parent=1 // pred_fallthru
      _
    // Predicated region
    $region18: #{cbr_forward.3} parent=1 // pred_check
      _
    $region19: #{cbr_forward.3} parent=1 // pred_check_branch
      %20 = sbr.rel (0) target = $region21
    $region20: #{cbr_forward.3} parent=1 // pred_region
      _
    $region21: #{cbr_forward.3} parent=1 // pred_fallthru
      _
    %v22 = vld [vmem:[%s0] sm:$0x3]
    %v23 = vld [vmem:[%s0 + $0x2] sm:$0x3]
    %v24 = vunpack.c.l.bf16 %v22
    %v25 = vunpack.c.l.bf16 %v23
    %vm26 = vcmask 60416
    %v27 = vsel %vm26, %v24, 0.0
    %v28 = vrot.slane %v27, 4
    %v29 = vadd.f32 %v27, %v28
    %v30 = vrot.slane %v29, 2
    %v31 = vadd.f32 %v29, %v30
    %v32 = vrot.slane %v31, 1
    %v33 = vadd.f32 %v31, %v32
    %v34 = vsel %vm26, %v25, 0.0
    %v35 = vrot.slane %v34, 4
    %v36 = vadd.f32 %v34, %v35
    %v37 = vrot.slane %v36, 2
    %v38 = vadd.f32 %v36, %v37
    %v39 = vrot.slane %v38, 1
    %v40 = vadd.f32 %v38, %v39
    %v41 = vmul.f32 %v33, 0.25
    %v42 = vmul.f32 %v40, 0.25
    %v43 = vmax.f32 %v41, 0.0
    %v44 = vmax.f32 %v42, 0.0
    %v45 = vld [vmem:[%s1] sm:$0xf]
    %v46 = vld [vmem:[%s2] sm:$0x1]
    %v47 = vpack.c.bf16 %v43, %v43
    %v48 = vpack.c.bf16 %v44, %v44
    %v50 = vlaneseq
    %v51 = vshrl.u32 %v50, 7
    %v52 = vsub.s32 0, %v51
    %v53 = vrot.slane %v46, %v52
    %v57 = vunpack.c.l.b16 %v47
    %v58 = vunpack.c.l.b16 %v48
    %vm59 = vcmask 1041409
    %v60 = vsel %vm59, %v58, %v57
    %v61 = vpack.c.b16 %v60, %v60
    %vm62 = vcmask 64512
    %v64 = vsel %vm62, %v61, 0
    %vm66 = vcmask 1043456
    %v68 = vsel %vm66, %v45, 0
    %70 = vmatprep.subr.bf16.mxu0 0
    %71 = vmatpush1.bf16.msra.mxu0 %v68
    %72 = vmatprep.subr.bf16.mxu0 0
    %73 = vmatpush1.bf16.msra.mxu0 0
    %74 = vmatprep.subr.bf16.mxu0 0
    %75 = vmatpush1.bf16.msra.mxu0 0
    %76 = vmatprep.subr.bf16.mxu0 0
    %77 = vmatpush1.bf16.msra.mxu0 0
    %78 = vmatprep.subr.bf16.mxu0 0
    %79 = vmatpush1.bf16.msra.mxu0 0
    %80 = vmatprep.subr.bf16.mxu0 0
    %81 = vmatpush1.bf16.msra.mxu0 0
    %82 = vmatprep.subr.bf16.mxu0 0
    %83 = vmatpush1.bf16.msra.mxu0 0
    %84 = vmatprep.subr.bf16.mxu0 0
    %85 = vmatpush1.bf16.msra.mxu0 0
    %86 = vmatprep.subr.bf16.mxu0 0
    %87 = vmatpush1.bf16.msra.mxu0 0
    %88 = vmatprep.subr.bf16.mxu0 0
    %89 = vmatpush1.bf16.msra.mxu0 0
    %90 = vmatprep.subr.bf16.mxu0 0
    %91 = vmatpush1.bf16.msra.mxu0 0
    %92 = vmatprep.subr.bf16.mxu0 0
    %93 = vmatpush1.bf16.msra.mxu0 0
    %94 = vmatprep.subr.bf16.mxu0 0
    %95 = vmatpush1.bf16.msra.mxu0 0
    %96 = vmatprep.subr.bf16.mxu0 0
    %97 = vmatpush1.bf16.msra.mxu0 0
    %98 = vmatprep.subr.bf16.mxu0 0
    %99 = vmatpush1.bf16.msra.mxu0 0
    %100 = vmatprep.subr.bf16.mxu0 0
    %101 = vmatpush1.bf16.msra.mxu0 0
    %102 = vmatprep.mubr.bf16.mxu0 0
    %103 = vmatmul.mubr.bf16.gmra.mrb[0].mxu0 %v64
    %v104 = vpop.f32.mrb[0].mxu0
    %v105 = vadd.f32 %v53, %v104
    %v106 = vpop.f32.mrb[0].mxu0
    %v107 = vpop.f32.mrb[0].mxu0
    %v108 = vpop.f32.mrb[0].mxu0
    %109 = vdwg.mxu0
    %v110 = vmax.f32 %v105, 0.0
    %v111 = vld [vmem:[%s3] sm:$0xf]
    %v112 = vld [vmem:[%s3 + $0x4] sm:$0xf]
    %v113 = vld [vmem:[%s3 + $0x8] sm:$0xf]
    %v114 = vld [vmem:[%s3 + $0xc] sm:$0xf]
    %v115 = vld [vmem:[%s4] sm:$0x1]
    %v116 = vpack.c.bf16 %v110, %v110
    %v118 = vlaneseq
    %v119 = vshrl.u32 %v118, 7
    %v120 = vsub.s32 0, %v119
    %v121 = vrot.slane %v115, %v120
    %v127 = vunpack.c.l.b16 %v111
    %v128 = vunpack.c.l.b16 %v112
    %v129 = vunpack.c.l.b16 %v113
    %v130 = vunpack.c.l.b16 %v114
    %v131 = vpack.c.b16 %v128, %v127
    %v132 = vpack.c.b16 %v130, %v129
    %vm135 = vcmask 261120
    %v137 = vsel %vm135, %v116, 0
    %139 = vmatprep.subr.bf16.mxu0 0
    %140 = vmatpush1.bf16.msra.mxu0 %v131
    %141 = vmatprep.subr.bf16.mxu0 0
    %142 = vmatpush1.bf16.msra.mxu0 %v132
    %143 = vmatprep.subr.bf16.mxu0 0
    %144 = vmatpush1.bf16.msra.mxu0 0
    %145 = vmatprep.subr.bf16.mxu0 0
    %146 = vmatpush1.bf16.msra.mxu0 0
    %147 = vmatprep.subr.bf16.mxu0 0
    %148 = vmatpush1.bf16.msra.mxu0 0
    %149 = vmatprep.subr.bf16.mxu0 0
    %150 = vmatpush1.bf16.msra.mxu0 0
    %151 = vmatprep.subr.bf16.mxu0 0
    %152 = vmatpush1.bf16.msra.mxu0 0
    %153 = vmatprep.subr.bf16.mxu0 0
    %154 = vmatpush1.bf16.msra.mxu0 0
    %155 = vmatprep.subr.bf16.mxu0 0
    %156 = vmatpush1.bf16.msra.mxu0 0
    %157 = vmatprep.subr.bf16.mxu0 0
    %158 = vmatpush1.bf16.msra.mxu0 0
    %159 = vmatprep.subr.bf16.mxu0 0
    %160 = vmatpush1.bf16.msra.mxu0 0
    %161 = vmatprep.subr.bf16.mxu0 0
    %162 = vmatpush1.bf16.msra.mxu0 0
    %163 = vmatprep.subr.bf16.mxu0 0
    %164 = vmatpush1.bf16.msra.mxu0 0
    %165 = vmatprep.subr.bf16.mxu0 0
    %166 = vmatpush1.bf16.msra.mxu0 0
    %167 = vmatprep.subr.bf16.mxu0 0
    %168 = vmatpush1.bf16.msra.mxu0 0
    %169 = vmatprep.subr.bf16.mxu0 0
    %170 = vmatpush1.bf16.msra.mxu0 0
    %171 = vmatprep.mubr.bf16.mxu0 0
    %172 = vmatmul.mubr.bf16.gmra.mrb[0].mxu0 %v137
    %v173 = vpop.f32.mrb[0].mxu0
    %v174 = vadd.f32 %v121, %v173
    %v175 = vpop.f32.mrb[0].mxu0
    %v176 = vpop.f32.mrb[0].mxu0
    %v177 = vpop.f32.mrb[0].mxu0
    %178 = vdwg.mxu0
    %vm179 = vcmask 74752
    %v180 = vsel %vm179, %v174, -inf
    %181 = vmax.xlane.f32.xlu0 %v180
    %v182 = vpop.xlane.xlu0 %181
    %v183 = vsub.f32 %v174, %v182
    %v184 = vmul.f32 %v183, 1.442695
    %v185 = vpow.pop %v184
    %v186 = vsel %vm179, %v185, 0.0
    %187 = vadd.xlane.f32.xlu0 %v186
    %v188 = vpop.xlane.xlu0 %187
    %v189 = vrcp.pop %v188
    %v190 = vmul.f32 %v185, %v189
    %191 = vst.msk [vmem:[#allocation2] sm:$0x3] %vm179, %v190
    // Predicated region
    $region22: #{cbr_forward.3} parent=1 // pred_check
      _
    $region23: #{cbr_forward.3} parent=1 // pred_check_branch
      %193 = sbr.rel (0) target = $region25
    $region24: #{cbr_forward.3} parent=1 // pred_region
      %s195 = ssub.s32 32, 32
      %196 = vsyncadd [#allocation3], %s195
      %s198 = sshll.u32 [#allocation2], 4
      %s199 = int_to_ptr.vmem [resolvable:$true] %s198
      %201 = dma.vmem_to_hbm [thread:$0]  %s199, 32, %s5, [#allocation3]
    $region25: #{cbr_forward.3} parent=1 // pred_fallthru
      _
    // Predicated region
    $region26: #{cbr_forward.3} parent=1 // pred_check
      _
    $region27: #{cbr_forward.3} parent=1 // pred_check_branch
      %203 = sbr.rel (0) target = $region29
    $region28: #{cbr_forward.3} parent=1 // pred_region
      %204 = dma.done [#allocation3], 32
    $region29: #{cbr_forward.3} parent=1 // pred_fallthru
      _
    %205 = vsyncpa [#allocation3], 1

// kernel: cbr_forward.2
$region0: #{cbr_forward.2}
  #allocation0 [shape = 'u32[]', space=smem, size = 0x4, offset = 0x4, fixed_abs, tag = 'smem constant byte address 0x4 - core index']
  #allocation1 [shape = 'u32[144,128]{1,0:T(1,128)}', space=vmem, size = 0x12000, scoped, tag = 'internal scratch']
  #allocation2 [shape = 'f32[50,8]{1,0:T(8,128)}', space=vmem, size = 0x7000, scoped, tag = 'scratch operand']
  %s0 = inlined_call_operand.vmem [shape: bf16[50,27], index: 0, kind: input, shape index: {}]
  %s1 = inlined_call_operand.vmem [shape: bf16[27,8], index: 1, kind: input, shape index: {}]
  %s2 = inlined_call_operand.vmem [shape: f32[1,8], index: 2, kind: input, shape index: {}]
  %s3 = inlined_call_operand.vmem [shape: bf16[8,8], index: 3, kind: output, shape index: {}]
  %s4 = sld [smem:[#allocation0]]
  $region22: #{cbr_forward.2} parent=0
    _
  %s6 = ssub.s32 1, %s4
  %s7 = scalar_select 0, %s6, %s4
  // Predicated region
  $region2: #{cbr_forward.2} parent=0 // pred_check
    _
  $region3: #{cbr_forward.2} parent=0 // pred_check_branch
    %9 = sbr.rel (0) target = $region5
  $region4: #{cbr_forward.2} parent=0 // pred_region
    _
  $region5: #{cbr_forward.2} parent=0 // pred_fallthru
    _
  // Predicated region
  $region6: #{cbr_forward.2} parent=0 // pred_check
    _
  $region7: #{cbr_forward.2} parent=0 // pred_check_branch
    %11 = sbr.rel (0) target = $region9
  $region8: #{cbr_forward.2} parent=0 // pred_region
    _
  $region9: #{cbr_forward.2} parent=0 // pred_fallthru
    _
  // Predicated region
  $region10: #{cbr_forward.2} parent=0 // pred_check
    _
  $region11: #{cbr_forward.2} parent=0 // pred_check_branch
    %13 = sbr.rel (0) target = $region13
  $region12: #{cbr_forward.2} parent=0 // pred_region
    _
  $region13: #{cbr_forward.2} parent=0 // pred_fallthru
    _
  %v15 = vld [vmem:[%s0] sm:$0xf]
  %v16 = vld [vmem:[%s0 + $0x4] sm:$0xf]
  %v17 = vld [vmem:[%s0 + $0x8] sm:$0xf]
  %v18 = vld [vmem:[%s0 + $0xc] sm:$0xf]
  %v19 = vld [vmem:[%s0 + $0x10] sm:$0xf]
  %v20 = vld [vmem:[%s0 + $0x14] sm:$0xf]
  %v21 = vld [vmem:[%s0 + $0x18] sm:$0x1]
  %v22 = vld [vmem:[%s1] sm:$0xf]
  %v23 = vld [vmem:[%s1 + $0x4] sm:$0xf]
  %v24 = vld [vmem:[%s1 + $0x8] sm:$0xf]
  %v25 = vld [vmem:[%s1 + $0xc] sm:$0x3]
  %v26 = vld [vmem:[%s2] sm:$0x1]
  %v28 = vlaneseq
  %v29 = vshrl.u32 %v28, 7
  %v30 = vsub.s32 0, %v29
  %v31 = vrot.slane %v26, %v30
  %v40 = vunpack.c.l.b16 %v15
  %v41 = vunpack.c.l.b16 %v16
  %v42 = vunpack.c.l.b16 %v17
  %v43 = vunpack.c.l.b16 %v18
  %v44 = vunpack.c.l.b16 %v19
  %v45 = vunpack.c.l.b16 %v20
  %v46 = vunpack.c.l.b16 %v21
  %v47 = vpack.c.b16 %v41, %v40
  %v48 = vpack.c.b16 %v43, %v42
  %v49 = vpack.c.b16 %v45, %v44
  %v50 = vpack.c.b16 %v46, %v46
  %v55 = vunpack.c.l.b16 %v22
  %v56 = vunpack.c.l.b16 %v23
  %v57 = vunpack.c.l.b16 %v24
  %v58 = vunpack.c.l.b16 %v25
  %v59 = vpack.c.b16 %v56, %v55
  %v60 = vpack.c.b16 %v58, %v57
  %vm62 = vcmask 220160
  %v64 = vsel %vm62, %v47, 0
  %v67 = vsel %vm62, %v48, 0
  %v70 = vsel %vm62, %v49, 0
  %v73 = vsel %vm62, %v50, 0
  %vm75 = vcmask 1044480
  %vm76 = vcmask 1045504
  %v77 = vsel %vm75, 4294967295, 65535
  %v78 = vsel %vm76, %v77, 0
  %v80 = vand.u32 %v60, %v78
  %82 = vmatprep.subr.bf16.mxu0 0
  %83 = vmatpush1.bf16.msra.mxu0 %v59
  %84 = vmatprep.subr.bf16.mxu0 0
  %85 = vmatpush1.bf16.msra.mxu0 %v80
  %86 = vmatprep.subr.bf16.mxu0 0
  %87 = vmatpush1.bf16.msra.mxu0 0
  %88 = vmatprep.subr.bf16.mxu0 0
  %89 = vmatpush1.bf16.msra.mxu0 0
  %90 = vmatprep.subr.bf16.mxu0 0
  %91 = vmatpush1.bf16.msra.mxu0 0
  %92 = vmatprep.subr.bf16.mxu0 0
  %93 = vmatpush1.bf16.msra.mxu0 0
  %94 = vmatprep.subr.bf16.mxu0 0
  %95 = vmatpush1.bf16.msra.mxu0 0
  %96 = vmatprep.subr.bf16.mxu0 0
  %97 = vmatpush1.bf16.msra.mxu0 0
  %98 = vmatprep.subr.bf16.mxu0 0
  %99 = vmatpush1.bf16.msra.mxu0 0
  %100 = vmatprep.subr.bf16.mxu0 0
  %101 = vmatpush1.bf16.msra.mxu0 0
  %102 = vmatprep.subr.bf16.mxu0 0
  %103 = vmatpush1.bf16.msra.mxu0 0
  %104 = vmatprep.subr.bf16.mxu0 0
  %105 = vmatpush1.bf16.msra.mxu0 0
  %106 = vmatprep.subr.bf16.mxu0 0
  %107 = vmatpush1.bf16.msra.mxu0 0
  %108 = vmatprep.subr.bf16.mxu0 0
  %109 = vmatpush1.bf16.msra.mxu0 0
  %110 = vmatprep.subr.bf16.mxu0 0
  %111 = vmatpush1.bf16.msra.mxu0 0
  %112 = vmatprep.subr.bf16.mxu0 0
  %113 = vmatpush1.bf16.msra.mxu0 0
  %114 = vmatprep.mubr.bf16.mxu0 0
  %115 = vmatmul.mubr.bf16.gmra.mrb[0].mxu0 %v64
  %v116 = vpop.f32.mrb[0].mxu0
  %v117 = vadd.f32 %v31, %v116
  %v118 = vpop.f32.mrb[0].mxu0
  %v119 = vpop.f32.mrb[0].mxu0
  %v120 = vadd.f32 %v31, %v119
  %v121 = vpop.f32.mrb[0].mxu0
  %122 = vmatprep.mubr.bf16.mxu0 0
  %123 = vmatmul.mubr.bf16.gmra.mrb[0].mxu0 %v67
  %v124 = vpop.f32.mrb[0].mxu0
  %v125 = vadd.f32 %v31, %v124
  %v126 = vpop.f32.mrb[0].mxu0
  %v127 = vpop.f32.mrb[0].mxu0
  %v128 = vadd.f32 %v31, %v127
  %v129 = vpop.f32.mrb[0].mxu0
  %130 = vmatprep.mubr.bf16.mxu0 0
  %131 = vmatmul.mubr.bf16.gmra.mrb[0].mxu0 %v70
  %v132 = vpop.f32.mrb[0].mxu0
  %v133 = vadd.f32 %v31, %v132
  %v134 = vpop.f32.mrb[0].mxu0
  %v135 = vpop.f32.mrb[0].mxu0
  %v136 = vadd.f32 %v31, %v135
  %v137 = vpop.f32.mrb[0].mxu0
  %138 = vmatprep.mubr.bf16.mxu0 0
  %139 = vmatmul.mubr.bf16.gmra.mrb[0].mxu0 %v73
  %v140 = vpop.f32.mrb[0].mxu0
  %v141 = vadd.f32 %v31, %v140
  %v142 = vpop.f32.mrb[0].mxu0
  %v143 = vpop.f32.mrb[0].mxu0
  %v144 = vpop.f32.mrb[0].mxu0
  %145 = vdwg.mxu0
  %v146 = vmax.f32 %v117, 0.0
  %v147 = vmax.f32 %v120, 0.0
  %v148 = vmax.f32 %v125, 0.0
  %v149 = vmax.f32 %v128, 0.0
  %v150 = vmax.f32 %v133, 0.0
  %v151 = vmax.f32 %v136, 0.0
  %v152 = vmax.f32 %v141, 0.0
  %vm153 = vcmask 64512
  %154 = vst.msk [vmem:[#allocation2] sm:$0xff] %vm153, %v146
  %155 = vst.msk [vmem:[#allocation2 + $0x8] sm:$0xff] %vm153, %v147
  %156 = vst.msk [vmem:[#allocation2 + $0x10] sm:$0xff] %vm153, %v148
  %157 = vst.msk [vmem:[#allocation2 + $0x18] sm:$0xff] %vm153, %v149
  %158 = vst.msk [vmem:[#allocation2 + $0x20] sm:$0xff] %vm153, %v150
  %159 = vst.msk [vmem:[#allocation2 + $0x28] sm:$0xff] %vm153, %v151
  %vm160 = vcmask 58368
  %161 = vst.msk [vmem:[#allocation2 + $0x30] sm:$0x3] %vm160, %v152
  %v162 = vld [vmem:[#allocation2] ss:$2 sm:$0x3]
  %s163 = scalar_lea.vmem [#allocation2], 1
  %v164 = vld [vmem:[%s163] ss:$2 sm:$0x3]
  %v165 = vmax.f32 %v162, %v164
  %s166 = scalar_lea.vmem [#allocation2], 2
  %v167 = vld [vmem:[%s166] ss:$2 sm:$0x3]
  %v168 = vmax.f32 %v165, %v167
  %s169 = scalar_lea.vmem [#allocation2], 5
  %v170 = vld [vmem:[%s169] ss:$2 sm:$0x3]
  %v171 = vmax.f32 %v168, %v170
  %s172 = scalar_lea.vmem [#allocation2], 6
  %v173 = vld [vmem:[%s172] ss:$2 sm:$0x3]
  %v174 = vmax.f32 %v171, %v173
  %s175 = scalar_lea.vmem [#allocation2], 7
  %v176 = vld [vmem:[%s175] ss:$2 sm:$0x3]
  %v177 = vmax.f32 %v174, %v176
  %s178 = scalar_lea.vmem [#allocation2], 10
  %v179 = vld [vmem:[%s178] ss:$2 sm:$0x3]
  %v180 = vmax.f32 %v177, %v179
  %s181 = scalar_lea.vmem [#allocation2], 11
  %v182 = vld [vmem:[%s181] ss:$2 sm:$0x3]
  %v183 = vmax.f32 %v180, %v182
  %s184 = scalar_lea.vmem [#allocation2], 12
  %v185 = vld [vmem:[%s184] ss:$2 sm:$0x3]
  %v186 = vmax.f32 %v183, %v185
  %v187 = vpack.c.bf16 %v186, %v186
  %vm188 = vcmask 57344
  %189 = vst.msk [vmem:[%s3] sm:$0x1] %vm188, %v187
  %v190 = vld [vmem:[%s178] ss:$2 sm:$0x3]
  %v191 = vld [vmem:[%s181] ss:$2 sm:$0x3]
  %v192 = vmax.f32 %v190, %v191
  %v193 = vld [vmem:[%s184] ss:$2 sm:$0x3]
  %v194 = vmax.f32 %v192, %v193
  %s195 = scalar_lea.vmem [#allocation2], 15
  %v196 = vld [vmem:[%s195] ss:$2 sm:$0x3]
  %v197 = vmax.f32 %v194, %v196
  %s198 = scalar_lea.vmem [#allocation2], 16
  %v199 = vld [vmem:[%s198] ss:$2 sm:$0x3]
  %v200 = vmax.f32 %v197, %v199
  %s201 = scalar_lea.vmem [#allocation2], 17
  %v202 = vld [vmem:[%s201] ss:$2 sm:$0x3]
  %v203 = vmax.f32 %v200, %v202
  %s204 = scalar_lea.vmem [#allocation2], 20
  %v205 = vld [vmem:[%s204] ss:$2 sm:$0x3]
  %v206 = vmax.f32 %v203, %v205
  %s207 = scalar_lea.vmem [#allocation2], 21
  %v208 = vld [vmem:[%s207] ss:$2 sm:$0x3]
  %v209 = vmax.f32 %v206, %v208
  %s210 = scalar_lea.vmem [#allocation2], 22
  %v211 = vld [vmem:[%s210] ss:$2 sm:$0x3]
  %v212 = vmax.f32 %v209, %v211
  %v213 = vpack.c.bf16 %v212, %v212
  %v215 = vunpack.c.l.b16 %v213
  %v216 = vpack.c.b16 %v215, %v215
  %v217 = vrot.slane %v216, 7
  %vm219 = vcmask 58369
  %220 = vst.msk [vmem:[%s3] sm:$0x2] %vm219, %v217
  %s221 = scalar_lea.vmem [#allocation2], 25
  %v222 = vld [vmem:[%s221] ss:$2 sm:$0x3]
  %s223 = scalar_lea.vmem [#allocation2], 26
  %v224 = vld [vmem:[%s223] ss:$2 sm:$0x3]
  %v225 = vmax.f32 %v222, %v224
  %s226 = scalar_lea.vmem [#allocation2], 27
  %v227 = vld [vmem:[%s226] ss:$2 sm:$0x3]
  %v228 = vmax.f32 %v225, %v227
  %s229 = scalar_lea.vmem [#allocation2], 30
  %v230 = vld [vmem:[%s229] ss:$2 sm:$0x3]
  %v231 = vmax.f32 %v228, %v230
  %s232 = scalar_lea.vmem [#allocation2], 31
  %v233 = vld [vmem:[%s232] ss:$2 sm:$0x3]
  %v234 = vmax.f32 %v231, %v233
  %s235 = scalar_lea.vmem [#allocation2], 32
  %v236 = vld [vmem:[%s235] ss:$2 sm:$0x3]
  %v237 = vmax.f32 %v234, %v236
  %s238 = scalar_lea.vmem [#allocation2], 35
  %v239 = vld [vmem:[%s238] ss:$2 sm:$0x3]
  %v240 = vmax.f32 %v237, %v239
  %s241 = scalar_lea.vmem [#allocation2], 36
  %v242 = vld [vmem:[%s241] ss:$2 sm:$0x3]
  %v243 = vmax.f32 %v240, %v242
  %s244 = scalar_lea.vmem [#allocation2], 37
  %v245 = vld [vmem:[%s244] ss:$2 sm:$0x3]
  %v246 = vmax.f32 %v243, %v245
  %v247 = vpack.c.bf16 %v246, %v246
  %v249 = vunpack.c.l.b16 %v247
  %v250 = vpack.c.b16 %v249, %v249
  %v251 = vrot.slane %v250, 6
  %vm253 = vcmask 59394
  %254 = vst.msk [vmem:[%s3] sm:$0x4] %vm253, %v251
  %v255 = vld [vmem:[%s238] ss:$2 sm:$0x3]
  %v256 = vld [vmem:[%s241] ss:$2 sm:$0x3]
  %v257 = vmax.f32 %v255, %v256
  %v258 = vld [vmem:[%s244] ss:$2 sm:$0x3]
  %v259 = vmax.f32 %v257, %v258
  %s260 = scalar_lea.vmem [#allocation2], 40
  %v261 = vld [vmem:[%s260] ss:$2 sm:$0x3]
  %v262 = vmax.f32 %v259, %v261
  %s263 = scalar_lea.vmem [#allocation2], 41
  %v264 = vld [vmem:[%s263] ss:$2 sm:$0x3]
  %v265 = vmax.f32 %v262, %v264
  %s266 = scalar_lea.vmem [#allocation2], 42
  %v267 = vld [vmem:[%s266] ss:$2 sm:$0x3]
  %v268 = vmax.f32 %v265, %v267
  %s269 = scalar_lea.vmem [#allocation2], 45
  %v270 = vld [vmem:[%s269] ss:$2 sm:$0x3]
  %v271 = vmax.f32 %v268, %v270
  %s272 = scalar_lea.vmem [#allocation2], 46
  %v273 = vld [vmem:[%s272] ss:$2 sm:$0x3]
  %v274 = vmax.f32 %v271, %v273
  %s275 = scalar_lea.vmem [#allocation2], 47
  %v276 = vld [vmem:[%s275] ss:$2 sm:$0x3]
  %v277 = vmax.f32 %v274, %v276
  %v278 = vpack.c.bf16 %v277, %v277
  %v280 = vunpack.c.l.b16 %v278
  %v281 = vpack.c.b16 %v280, %v280
  %v282 = vrot.slane %v281, 5
  %vm284 = vcmask 60419
  %285 = vst.msk [vmem:[%s3] sm:$0x8] %vm284, %v282
  // Predicated region
  $region14: #{cbr_forward.2} parent=0 // pred_check
    _
  $region15: #{cbr_forward.2} parent=0 // pred_check_branch
    %287 = sbr.rel (0) target = $region17
  $region16: #{cbr_forward.2} parent=0 // pred_region
    _
  $region17: #{cbr_forward.2} parent=0 // pred_fallthru
    _
  // Predicated region
  $region18: #{cbr_forward.2} parent=0 // pred_check
    _
  $region19: #{cbr_forward.2} parent=0 // pred_check_branch
    %289 = sbr.rel (0) target = $region21
  $region20: #{cbr_forward.2} parent=0 // pred_region
    _
  $region21: #{cbr_forward.2} parent=0 // pred_fallthru
    _

</llo_original>
